<compile_context>
chip_gen: v5e
topology: v5e:2x2
jax: 0.10.0
libtpu: 0.0.40
codegen_flags: <defaults>
</compile_context>

<pallas_src>
import math
import functools

import jax
import jax.numpy as jnp
from jax.experimental import pallas as pl
from jax.experimental.pallas import tpu as pltpu


# ---------------------------------------------------------------------------
# Tiling / VMEM helpers
# ---------------------------------------------------------------------------
_DEFAULT_SCOPED_VMEM = 32 * 1024 * 1024
_VMEM_CAP = 64 * 1024 * 1024          # v7x physical VMEM per TensorCore


def _tile(dim, target):
    """Choose (tile, padded_dim) for one axis.

    Small dims (<= target) use a single full block (block == array dim is
    always legal).  Larger dims use the largest standard tile <= target that
    divides the dim; if none divides, the dim is padded up to a multiple of
    the tile so pipelining and (8,128) alignment are kept (no giant block).
    """
    if dim <= target:
        return dim, dim
    for t in (target, 512, 256, 128):
        if t <= target and dim % t == 0:
            return t, dim
    t = min(target, 256)
    return t, ((dim + t - 1) // t) * t


def _vmem_limit(bytes_needed):
    """Explicit scoped-VMEM request; None keeps the compiler default."""
    if bytes_needed <= _DEFAULT_SCOPED_VMEM:
        return None
    return min(bytes_needed, _VMEM_CAP)


# ---------------------------------------------------------------------------
# Tiled linear: y = x @ W + b   (accumulates directly into the output block)
# ---------------------------------------------------------------------------
def _linear_kernel(x_ref, w_ref, b_ref, o_ref, *, compute_dtype):
    kk = pl.program_id(2)
    part = jnp.dot(
        x_ref[...].astype(compute_dtype),
        w_ref[...].astype(compute_dtype),
        preferred_element_type=jnp.float32,
    )

    @pl.when(kk == 0)
    def _():
        o_ref[...] = part + b_ref[...]          # bias add in f32

    @pl.when(kk != 0)
    def _():
        o_ref[...] += part                      # f32 output block is VMEM-resident


def linear(x2d, w, b, *, tm=512, tn=512, tk=512, compute_dtype=jnp.float32):
    """x2d: (M, K), w: (K, N), b: (1, N) -> (M, N) float32.

    Default 512 tiles suit v5e/v6e (128 MiB VMEM); they still fit comfortably
    in v7x's 32 MiB scoped budget because there is no accumulator scratch.
    """
    M, K = x2d.shape
    N = w.shape[1]
    tm, Mp = _tile(M, tm)
    tn, Np = _tile(N, tn)
    tk, Kp = _tile(K, tk)
    if (Mp, Kp) != (M, K):
        x2d = jnp.pad(x2d, ((0, Mp - M), (0, Kp - K)))
    if (Kp, Np) != (K, N):
        w = jnp.pad(w, ((0, Kp - K), (0, Np - N)))
    if Np != N:
        b = jnp.pad(b, ((0, 0), (0, Np - N)))

    bytes_needed = 4 * (2 * (tm * tk + tk * tn + tn) + 2 * tm * tn)
    out = pl.pallas_call(
        functools.partial(_linear_kernel, compute_dtype=compute_dtype),
        out_shape=jax.ShapeDtypeStruct((Mp, Np), jnp.float32),
        grid=(Mp // tm, Np // tn, Kp // tk),
        in_specs=[
            pl.BlockSpec((tm, tk), lambda i, j, kk: (i, kk)),
            pl.BlockSpec((tk, tn), lambda i, j, kk: (kk, j)),
            pl.BlockSpec((1, tn), lambda i, j, kk: (0, j)),
        ],
        out_specs=pl.BlockSpec((tm, tn), lambda i, j, kk: (i, j)),
        compiler_params=pltpu.CompilerParams(
            dimension_semantics=("parallel", "parallel", "arbitrary"),
            vmem_limit_bytes=_vmem_limit(bytes_needed),
        ),
    )(x2d, w, b)
    if (Mp, Np) != (M, N):
        out = out[:M, :N]
    return out


# ---------------------------------------------------------------------------
# Flash-style scaled-dot-product attention, heads on the grid
#   q/k/v: (B*H, L, Dh); the 1/sqrt(Dh) scale is already folded into q.
# ---------------------------------------------------------------------------
def _sdpa_kernel(q_ref, k_ref, v_ref, o_ref, m_sc, l_sc, acc_sc, *,
                 tk, kv_len, masked, compute_dtype):
    kv = pl.program_id(2)

    @pl.when(kv == 0)
    def _():
        m_sc[...] = jnp.full_like(m_sc, -jnp.inf)
        l_sc[...] = jnp.zeros_like(l_sc)
        acc_sc[...] = jnp.zeros_like(acc_sc)

    q = q_ref[0].astype(compute_dtype)            # (tq, Dh)
    k = k_ref[0].astype(compute_dtype)            # (tk, Dh)

    # q @ k^T: contract the last dims (no explicit transpose / XLU work).
    s = jax.lax.dot_general(
        q, k, (((1,), (1,)), ((), ())), preferred_element_type=jnp.float32
    )                                             # (tq, tk) f32

    if masked:  # static flag: only emitted when Lk was zero-padded to the tile
        col = jax.lax.broadcasted_iota(jnp.int32, s.shape, 1) + kv * tk
        s = jnp.where(col < kv_len, s, -1e30)
    # TODO(synk): a user-supplied additive attention mask would be added to `s`
    # here, before the online-softmax update.

    m_prev = m_sc[:, 0:1]                         # (tq, 1)
    l_prev = l_sc[:, 0:1]
    m_new = jnp.maximum(m_prev, jnp.max(s, axis=-1, keepdims=True))
    alpha = jnp.exp(m_prev - m_new)               # (tq, 1)
    # TODO(synk): on v6e/v7x this exp (the EUP-bound op) could run in bf16.
    p = jnp.exp(s - m_new)                        # (tq, tk)
    l_new = alpha * l_prev + jnp.sum(p, axis=-1, keepdims=True)

    acc_sc[...] = alpha * acc_sc[...] + jnp.dot(
        p.astype(compute_dtype), v_ref[0].astype(compute_dtype),
        preferred_element_type=jnp.float32,
    )
    # Lane-replicated running stats -> lane-dense stores every kv step.
    m_sc[...] = jnp.broadcast_to(m_new, m_sc.shape)
    l_sc[...] = jnp.broadcast_to(l_new, l_sc.shape)

    @pl.when(kv == pl.num_programs(2) - 1)
    def _():
        inv = pl.reciprocal(l_sc[:, 0:1], approx=False)      # exact divide
        o_ref[0] = (acc_sc[...] * inv).astype(o_ref.dtype)   # single dense store


def sdpa(q, k, v, *, tq=256, tk=256, compute_dtype=jnp.float32):
    """q: (BH, Lq, Dh), k/v: (BH, Lk, Dh) -> (BH, Lq, Dh).

    Heads live on the leading grid axis, so every block / accumulator / PV
    output is full-width along Dh.  Defaults (256, 256) fit the 32 MiB scoped
    VMEM on every generation; v5e (128 MiB VMEM, lower HBM BW) likes tq=512.
    """
    BH, Lq, Dh = q.shape
    Lk = k.shape[1]
    tq, Lqp = _tile(Lq, tq)
    tk, Lkp = _tile(Lk, tk)
    if Lqp != Lq:
        q = jnp.pad(q, ((0, 0), (0, Lqp - Lq), (0, 0)))
    if Lkp != Lk:
        k = jnp.pad(k, ((0, 0), (0, Lkp - Lk), (0, 0)))
        v = jnp.pad(v, ((0, 0), (0, Lkp - Lk), (0, 0)))

    kern = functools.partial(
        _sdpa_kernel, tk=tk, kv_len=Lk, masked=(Lkp != Lk),
        compute_dtype=compute_dtype)
    bytes_needed = 4 * (2 * (2 * tq * Dh + 2 * tk * Dh)
                        + tq * (2 * 128 + Dh) + tq * tk)
    out = pl.pallas_call(
        kern,
        out_shape=jax.ShapeDtypeStruct((BH, Lqp, Dh), jnp.float32),
        grid=(BH, Lqp // tq, Lkp // tk),
        in_specs=[
            pl.BlockSpec((1, tq, Dh), lambda b, qi, ki: (b, qi, 0)),
            pl.BlockSpec((1, tk, Dh), lambda b, qi, ki: (b, ki, 0)),
            pl.BlockSpec((1, tk, Dh), lambda b, qi, ki: (b, ki, 0)),
        ],
        out_specs=pl.BlockSpec((1, tq, Dh), lambda b, qi, ki: (b, qi, 0)),
        scratch_shapes=[
            pltpu.VMEM((tq, 128), jnp.float32),   # running max (lane-replicated)
            pltpu.VMEM((tq, 128), jnp.float32),   # running sum (lane-replicated)
            pltpu.VMEM((tq, Dh), jnp.float32),    # un-normalized output accum
        ],
        compiler_params=pltpu.CompilerParams(
            dimension_semantics=("parallel", "parallel", "arbitrary"),
            vmem_limit_bytes=_vmem_limit(bytes_needed),
        ),
    )(q, k, v)
    if Lqp != Lq:
        out = out[:, :Lq, :]
    return out


# ---------------------------------------------------------------------------
# Parameters
# ---------------------------------------------------------------------------
def init_params(key, d_model):
    """Mimic nn.Linear default init: U(-1/sqrt(fan_in), +1/sqrt(fan_in))."""
    ks = jax.random.split(key, 8)
    bound = 1.0 / math.sqrt(d_model)

    def w(kk):
        return jax.random.uniform(kk, (d_model, d_model), jnp.float32, -bound, bound)

    def b(kk):
        return jax.random.uniform(kk, (1, d_model), jnp.float32, -bound, bound)

    return {
        "w_q": w(ks[0]), "b_q": b(ks[1]),
        "w_k": w(ks[2]), "b_k": b(ks[3]),
        "w_v": w(ks[4]), "b_v": b(ks[5]),
        "w_concat": w(ks[6]), "b_concat": b(ks[7]),
    }


def prepare_params(params, n_head):
    """One-time parameter transform:
       * fold the 1/sqrt(Dh) attention scale into w_q / b_q,
       * pre-concatenate W_qkv = [w_q*s | w_k | w_v] (self-attention fast path)
         and W_kv = [w_k | w_v] (k==v cross-attention fast path)."""
    d_model = params["w_q"].shape[0]
    scale = 1.0 / math.sqrt(d_model // n_head)
    p = dict(params)
    p["w_q"] = params["w_q"] * scale
    p["b_q"] = params["b_q"] * scale
    p["w_qkv"] = jnp.concatenate([p["w_q"], p["w_k"], p["w_v"]], axis=1)
    p["b_qkv"] = jnp.concatenate([p["b_q"], p["b_k"], p["b_v"]], axis=1)
    p["w_kv"] = jnp.concatenate([p["w_k"], p["w_v"]], axis=1)
    p["b_kv"] = jnp.concatenate([p["b_k"], p["b_v"]], axis=1)
    return p


# ---------------------------------------------------------------------------
# Module forward
# ---------------------------------------------------------------------------
def multi_head_attention(params, q, k, v, n_head, *, compute_dtype=jnp.float32):
    """Forward pass of the PyTorch MultiHeadAttention module (mask=None path).
    `params` must come from prepare_params()."""
    B, Lq, D = q.shape
    Lk = k.shape[1]
    Dh = D // n_head

    q2d = q.reshape(B * Lq, D)
    if q is k and k is v:
        # Self-attention: single fused x @ [w_q*s | w_k | w_v] matmul.
        qkv = linear(q2d, params["w_qkv"], params["b_qkv"], compute_dtype=compute_dtype)
        qp, kp, vp = qkv[:, :D], qkv[:, D:2 * D], qkv[:, 2 * D:]
    elif k is v:
        # Shared-KV cross-attention: fuse the K/V projections.
        k2d = k.reshape(B * Lk, D)
        qp = linear(q2d, params["w_q"], params["b_q"], compute_dtype=compute_dtype)
        kvp = linear(k2d, params["w_kv"], params["b_kv"], compute_dtype=compute_dtype)
        kp, vp = kvp[:, :D], kvp[:, D:]
    else:
        qp = linear(q2d, params["w_q"], params["b_q"], compute_dtype=compute_dtype)
        kp = linear(k.reshape(B * Lk, D), params["w_k"], params["b_k"],
                    compute_dtype=compute_dtype)
        vp = linear(v.reshape(B * Lk, D), params["w_v"], params["b_v"],
                    compute_dtype=compute_dtype)

    # split: (B*L, D) -> (B, H, L, Dh) -> heads onto the kernel grid.
    def split(x2d, L):
        return (x2d.reshape(B, L, n_head, Dh)
                   .transpose(0, 2, 1, 3)
                   .reshape(B * n_head, L, Dh))

    oh = sdpa(split(qp, Lq), split(kp, Lk), split(vp, Lk),
              compute_dtype=compute_dtype)                        # (B*H, Lq, Dh)

    # concat: inverse of split, back to (B*Lq, D).
    o2d = (oh.reshape(B, n_head, Lq, Dh)
             .transpose(0, 2, 1, 3)
             .reshape(B * Lq, D))
    out = linear(o2d, params["w_concat"], params["b_concat"],
                 compute_dtype=compute_dtype)
    return out.reshape(B, Lq, D)


# ---------------------------------------------------------------------------
# Pure-JAX reference (uses the raw, un-folded parameters)
# ---------------------------------------------------------------------------
def reference_mha(raw_params, q, k, v, n_head):
    B, Lq, D = q.shape
    Lk = k.shape[1]
    Dh = D // n_head

    def lin(x, w, b):
        return x @ w + b

    def split(x, L):
        return x.reshape(B, L, n_head, Dh).transpose(0, 2, 1, 3)

    qp = split(lin(q, raw_params["w_q"], raw_params["b_q"]), Lq)
    kp = split(lin(k, raw_params["w_k"], raw_params["b_k"]), Lk)
    vp = split(lin(v, raw_params["w_v"], raw_params["b_v"]), Lk)
    s = jnp.einsum("bhqd,bhkd->bhqk", qp, kp) / math.sqrt(Dh)
    p = jax.nn.softmax(s, axis=-1)
    o = jnp.einsum("bhqk,bhkd->bhqd", p, vp)
    o = o.transpose(0, 2, 1, 3).reshape(B, Lq, D)
    return o @ raw_params["w_concat"] + raw_params["b_concat"]


if __name__ == "__main__":
    key = jax.random.PRNGKey(0)

    # --- small module-sized shapes, cross attention (distinct q / k / v) -----
    B, L, d_model, n_head = 2, 8, 32, 4
    kq, kk_, kv_, kp, kq2 = jax.random.split(key, 5)
    q = jax.random.normal(kq, (B, L, d_model), jnp.float32)
    k = jax.random.normal(kk_, (B, L, d_model), jnp.float32)
    v = jax.random.normal(kv_, (B, L, d_model), jnp.float32)
    raw = init_params(kp, d_model)
    params = prepare_params(raw, n_head)

    out = multi_head_attention(params, q, k, v, n_head)
    jax.block_until_ready(out)
    assert out.shape == (B, L, d_model)
    ref = reference_mha(raw, q, k, v, n_head)
    err = float(jnp.max(jnp.abs(out - ref)))
    assert err < 2e-2, f"cross-attention mismatch: max abs err = {err}"

    # --- self-attention fast path (q is k is v -> single fused W_qkv matmul) -
    out_sa = multi_head_attention(params, q, q, q, n_head)
    ref_sa = reference_mha(raw, q, q, q, n_head)
    err_sa = float(jnp.max(jnp.abs(out_sa - ref_sa)))
    assert err_sa < 2e-2, f"self-attention mismatch: max abs err = {err_sa}"

    # --- bf16-operand matmuls with f32 accumulation (MXU-native fast mode) ---
    out_bf = multi_head_attention(params, q, k, v, n_head,
                                  compute_dtype=jnp.bfloat16)
    err_bf = float(jnp.max(jnp.abs(out_bf - ref)))
    assert err_bf < 1e-1, f"bf16 compute mismatch: max abs err = {err_bf}"

    # --- non-divisible length: exercises row padding + in-kernel key masking -
    B2, L2, d2, h2 = 1, 520, 128, 2
    q2 = jax.random.normal(kq2, (B2, L2, d2), jnp.float32)
    raw2 = init_params(jax.random.fold_in(kp, 1), d2)
    params2 = prepare_params(raw2, h2)
    out2 = multi_head_attention(params2, q2, q2, q2, h2)
    jax.block_until_ready(out2)
    assert out2.shape == (B2, L2, d2)
    ref2 = reference_mha(raw2, q2, q2, q2, h2)
    err2 = float(jnp.max(jnp.abs(out2 - ref2)))
    assert err2 < 2e-2, f"padded/masked mismatch: max abs err = {err2}"

    print("KERNEL_OK")
</pallas_src>

<mosaic_0001>
module attributes {stable_mosaic.version = 11 : i64} {
  func.func @_linear_kernel(%arg0: i32, %arg1: i32, %arg2: i32, %arg3: memref<16x32xf32, #tpu.memory_space<vmem>>, %arg4: memref<32x32xf32, #tpu.memory_space<vmem>>, %arg5: memref<1x32xf32, #tpu.memory_space<vmem>>, %arg6: memref<16x32xf32, #tpu.memory_space<vmem>>) attributes {dimension_semantics = [#tpu.dimension_semantics<parallel>, #tpu.dimension_semantics<parallel>, #tpu.dimension_semantics<arbitrary>], iteration_bounds = array<i64: 1, 1, 1>, scalar_prefetch = 0 : i64, scratch_operands = 0 : i64, tpu.core_type = #tpu.core_type<tc>, window_params = [{transform_indices = @transform_0, window_bounds = array<i64: 16, 32>}, {transform_indices = @transform_1, window_bounds = array<i64: 32, 32>}, {transform_indices = @transform_2, window_bounds = array<i64: 1, 32>}, {transform_indices = @transform_3, window_bounds = array<i64: 16, 32>}]} {
    %c0 = arith.constant 0 : index
    %c0_0 = arith.constant 0 : index
    %0 = vector.load %arg3[%c0, %c0_0] : memref<16x32xf32, #tpu.memory_space<vmem>>, vector<16x32xf32>
    %c0_1 = arith.constant 0 : index
    %c0_2 = arith.constant 0 : index
    %1 = vector.load %arg4[%c0_1, %c0_2] : memref<32x32xf32, #tpu.memory_space<vmem>>, vector<32x32xf32>
    %cst = arith.constant dense<0.000000e+00> : vector<16x32xf32>
    %2 = tpu.matmul %0, %1, %cst {dimension_numbers = #tpu.dot_dimension_numbers<[1], [0], [0], [1], [0, 0, 1, 1], [], []>} : vector<16x32xf32>, vector<32x32xf32>, vector<16x32xf32> -> vector<16x32xf32>
    %c0_i32 = arith.constant 0 : i32
    %3 = arith.cmpi eq, %arg2, %c0_i32 : i32
    %4 = arith.extui %3 : i1 to i32
    %c0_i32_3 = arith.constant 0 : i32
    %5 = arith.cmpi ne, %4, %c0_i32_3 : i32
    scf.if %5 {
      %c0_6 = arith.constant 0 : index
      %c0_7 = arith.constant 0 : index
      %9 = vector.load %arg5[%c0_6, %c0_7] : memref<1x32xf32, #tpu.memory_space<vmem>>, vector<1x32xf32>
      %10 = vector.broadcast %9 : vector<1x32xf32> to vector<16x32xf32>
      %11 = arith.addf %2, %10 : vector<16x32xf32>
      %c0_8 = arith.constant 0 : index
      %c0_9 = arith.constant 0 : index
      %12 = vector.load %arg6[%c0_8, %c0_9] : memref<16x32xf32, #tpu.memory_space<vmem>>, vector<16x32xf32>
      tpu.vector_store %arg6[%c0_8, %c0_9], %11 {strides = array<i32>} : memref<16x32xf32, #tpu.memory_space<vmem>>, vector<16x32xf32>,
    } else {
    }
    %c0_i32_4 = arith.constant 0 : i32
    %6 = arith.cmpi ne, %arg2, %c0_i32_4 : i32
    %7 = arith.extui %6 : i1 to i32
    %c0_i32_5 = arith.constant 0 : i32
    %8 = arith.cmpi ne, %7, %c0_i32_5 : i32
    scf.if %8 {
      %c0_6 = arith.constant 0 : index
      %c0_7 = arith.constant 0 : index
      %9 = vector.load %arg6[%c0_6, %c0_7] : memref<16x32xf32, #tpu.memory_space<vmem>>, vector<16x32xf32>
      %10 = arith.addf %9, %2 : vector<16x32xf32>
      %c0_8 = arith.constant 0 : index
      %c0_9 = arith.constant 0 : index
      %11 = vector.load %arg6[%c0_8, %c0_9] : memref<16x32xf32, #tpu.memory_space<vmem>>, vector<16x32xf32>
      tpu.vector_store %arg6[%c0_8, %c0_9], %10 {strides = array<i32>} : memref<16x32xf32, #tpu.memory_space<vmem>>, vector<16x32xf32>,
    } else {
    }
    return
  }
  func.func @transform_0(%arg0: i32, %arg1: i32, %arg2: i32) -> (i32, i32) {
    %c0_i32 = arith.constant 0 : i32
    return %arg0, %arg2 : i32, i32
  }
  func.func @transform_1(%arg0: i32, %arg1: i32, %arg2: i32) -> (i32, i32) {
    %c0_i32 = arith.constant 0 : i32
    return %arg2, %arg1 : i32, i32
  }
  func.func @transform_2(%arg0: i32, %arg1: i32, %arg2: i32) -> (i32, i32) {
    %c0_i32 = arith.constant 0 : i32
    %c0_i32_0 = arith.constant 0 : i32
    return %c0_i32, %arg1 : i32, i32
  }
  func.func @transform_3(%arg0: i32, %arg1: i32, %arg2: i32) -> (i32, i32) {
    %c0_i32 = arith.constant 0 : i32
    return %arg0, %arg1 : i32, i32
  }
}

</mosaic_0001>

<llo_original>
// kernel: tpu_custom_call.1
$region0: #{tpu_custom_call.1}
  #allocation0 [shape = 'u32[]', space=smem, size = 0x4, offset = 0x4, fixed_abs, tag = 'smem constant byte address 0x4 - core index']
  #allocation1 [shape = 'u32[72,128]{1,0:T(1,128)}', space=vmem, size = 0x9000, scoped, tag = 'internal scratch']
  %s0 = inlined_call_operand.hbm [shape: f32[16,32], index: 0, kind: input, shape index: {}]
  %s1 = inlined_call_operand.hbm [shape: f32[32,32], index: 1, kind: input, shape index: {}]
  %s2 = inlined_call_operand.vmem [shape: f32[1,32], index: 2, kind: input, shape index: {}]
  %s3 = inlined_call_operand.hbm [shape: f32[16,32], index: 3, kind: output, shape index: {}]
  %s4 = sld [smem:[#allocation0]]
  $region38: #{tpu_custom_call.1} parent=0
    _
  %s6 = ssub.s32 1, %s4
  %s7 = scalar_select 0, %s6, %s4
  $region1: #{tpu_custom_call.1} parent=0
    #allocation2 [shape = 'u8[8192]{0}', space=vmem, size = 0x2000, scoped, tag = 'input window, operand 0, single buffered']
    #allocation3 [shape = 's32[1]{0}', space=sflag, size = 0x4, scoped, tag = 'scoped memory for tpu_custom_call.1']
    #allocation4 [shape = 's32[1]{0}', space=sflag, size = 0x4, scoped, tag = 'scoped memory for tpu_custom_call.1']
    #allocation5 [shape = 'u8[16384]{0}', space=vmem, size = 0x4000, scoped, tag = 'input window, operand 1, single buffered']
    #allocation6 [shape = 's32[1]{0}', space=sflag, size = 0x4, scoped, tag = 'scoped memory for tpu_custom_call.1']
    #allocation7 [shape = 'u8[8192]{0}', space=vmem, size = 0x2000, scoped, tag = 'output window, operand 0, single buffered']
    %8 = vsyncpa [#allocation3], 0
    %9 = vsyncpa [#allocation6], 0
    %10 = vsyncpa [#allocation4], 0
    // Predicated region
    $region2: #{tpu_custom_call.1} parent=1 // pred_check
      _
    $region3: #{tpu_custom_call.1} parent=1 // pred_check_branch
      %12 = sbr.rel (0) target = $region5
    $region4: #{tpu_custom_call.1} parent=1 // pred_region
      %14 = vsyncadd [#allocation3], 0
      %s15 = sshll.u32 %s0, 4
      %s16 = int_to_ptr.hbm [resolvable:$true] %s15
      %s17 = sshll.u32 [#allocation2], 4
      %s18 = int_to_ptr.vmem [resolvable:$true] %s17
      %23 = dma.hbm_to_vmem [thread:$0]  %s16, 256, %s18, [#allocation3], 128, 128, 8
    $region5: #{tpu_custom_call.1} parent=1 // pred_fallthru
      _
    // Predicated region
    $region6: #{tpu_custom_call.1} parent=1 // pred_check
      _
    $region7: #{tpu_custom_call.1} parent=1 // pred_check_branch
      %25 = sbr.rel (0) target = $region9
    $region8: #{tpu_custom_call.1} parent=1 // pred_region
      %27 = vsyncadd [#allocation6], 0
      %s28 = sshll.u32 %s1, 4
      %s29 = int_to_ptr.hbm [resolvable:$true] %s28
      %s30 = sshll.u32 [#allocation5], 4
      %s31 = int_to_ptr.vmem [resolvable:$true] %s30
      %36 = dma.hbm_to_vmem [thread:$0]  %s29, 512, %s31, [#allocation6], 128, 128, 8
    $region9: #{tpu_custom_call.1} parent=1 // pred_fallthru
      _
    // Predicated region
    $region10: #{tpu_custom_call.1} parent=1 // pred_check
      _
    $region11: #{tpu_custom_call.1} parent=1 // pred_check_branch
      %38 = sbr.rel (0) target = $region13
    $region12: #{tpu_custom_call.1} parent=1 // pred_region
      _
    $region13: #{tpu_custom_call.1} parent=1 // pred_fallthru
      _
    // Predicated region
    $region14: #{tpu_custom_call.1} parent=1 // pred_check
      _
    $region15: #{tpu_custom_call.1} parent=1 // pred_check_branch
      %40 = sbr.rel (0) target = $region17
    $region16: #{tpu_custom_call.1} parent=1 // pred_region
      %42 = dma.done [#allocation3], 256
    $region17: #{tpu_custom_call.1} parent=1 // pred_fallthru
      _
    // Predicated region
    $region18: #{tpu_custom_call.1} parent=1 // pred_check
      _
    $region19: #{tpu_custom_call.1} parent=1 // pred_check_branch
      %44 = sbr.rel (0) target = $region21
    $region20: #{tpu_custom_call.1} parent=1 // pred_region
      %46 = dma.done [#allocation6], 512
    $region21: #{tpu_custom_call.1} parent=1 // pred_fallthru
      _
    %v47 = vld [vmem:[#allocation2] sm:$0xff]
    %v48 = vld [vmem:[#allocation2 + $0x8] sm:$0xff]
    %v49 = vld [vmem:[#allocation5] sm:$0xff]
    %v50 = vld [vmem:[#allocation5 + $0x8] sm:$0xff]
    %v51 = vld [vmem:[#allocation5 + $0x10] sm:$0xff]
    %v52 = vld [vmem:[#allocation5 + $0x18] sm:$0xff]
    %vm53 = vcmask 261120
    %v55 = vsel %vm53, %v47, 0
    %v58 = vsel %vm53, %v48, 0
    %60 = vmatpush.msra.mxu0 0.0
    %61 = vmatpush.msra.mxu0 0.0
    %62 = vmatpush.msra.mxu0 0.0
    %63 = vmatpush.msra.mxu0 0.0
    %64 = vmatpush.msra.mxu0 0.0
    %65 = vmatpush.msra.mxu0 0.0
    %66 = vmatpush.msra.mxu0 0.0
    %67 = vmatpush.msra.mxu0 0.0
    %68 = vmatpush.msra.mxu0 0.0
    %69 = vmatpush.msra.mxu0 0.0
    %70 = vmatpush.msra.mxu0 0.0
    %71 = vmatpush.msra.mxu0 0.0
    %72 = vmatpush.msra.mxu0 %v52
    %73 = vmatpush.msra.mxu0 %v51
    %74 = vmatpush.msra.mxu0 %v50
    %75 = vmatpush.msra.mxu0 %v49
    %76 = vmatmul.f32.gmra.mxu0 %v55
    %v77 = vpop.f32.mrf.mxu0
    %v78 = vadd.f32 0.0, %v77
    %79 = vmatmul.f32.gmra.mxu0 %v58
    %v80 = vpop.f32.mrf.mxu0
    %v81 = vadd.f32 0.0, %v80
    %82 = vdwg.mxu0
    %p83 = scmp.eq.s32.totalorder 0, 0
    // Predicated region
    $region22: #{tpu_custom_call.1} parent=1 // pred_check
      %p84 = pneg %p83
    $region23: #{tpu_custom_call.1} parent=1 // pred_check_branch
      %86 = sbr.rel (%p84) target = $region25
    $region24: #{tpu_custom_call.1} parent=1 // pred_region
      %v87 = vld [vmem:[%s2] sm:$0x1]
      %v89 = vperm.slane %v87, 0
      %v91 = vadd.f32 %v78, %v89
      %v92 = vadd.f32 %v81, %v89
      %93 = vst.msk [vmem:[#allocation7] sm:$0xff] %vm53, %v91
      %94 = vst.msk [vmem:[#allocation7 + $0x8] sm:$0xff] %vm53, %v92
    $region25: #{tpu_custom_call.1} parent=1 // pred_fallthru
      _
    %p95 = scmp.ne.s32.totalorder 0, 0
    // Predicated region
    $region26: #{tpu_custom_call.1} parent=1 // pred_check
      %p96 = pneg %p95
    $region27: #{tpu_custom_call.1} parent=1 // pred_check_branch
      %98 = sbr.rel (%p96) target = $region29
    $region28: #{tpu_custom_call.1} parent=1 // pred_region
      %v99 = vld [vmem:[#allocation7] sm:$0xff]
      %v100 = vld [vmem:[#allocation7 + $0x8] sm:$0xff]
      %v101 = vadd.f32 %v99, %v78
      %v102 = vadd.f32 %v100, %v81
      %103 = vst.msk [vmem:[#allocation7] sm:$0xff] %vm53, %v101
      %104 = vst.msk [vmem:[#allocation7 + $0x8] sm:$0xff] %vm53, %v102
    $region29: #{tpu_custom_call.1} parent=1 // pred_fallthru
      _
    // Predicated region
    $region30: #{tpu_custom_call.1} parent=1 // pred_check
      _
    $region31: #{tpu_custom_call.1} parent=1 // pred_check_branch
      %106 = sbr.rel (0) target = $region33
    $region32: #{tpu_custom_call.1} parent=1 // pred_region
      %108 = vsyncadd [#allocation4], 0
      %s109 = sshll.u32 [#allocation7], 4
      %s110 = int_to_ptr.vmem [resolvable:$true] %s109
      %s111 = sshll.u32 %s3, 4
      %s112 = int_to_ptr.hbm [resolvable:$true] %s111
      %117 = dma.vmem_to_hbm [thread:$0]  %s110, 256, %s112, [#allocation4], 128, 128, 8
    $region33: #{tpu_custom_call.1} parent=1 // pred_fallthru
      _
    // Predicated region
    $region34: #{tpu_custom_call.1} parent=1 // pred_check
      _
    $region35: #{tpu_custom_call.1} parent=1 // pred_check_branch
      %119 = sbr.rel (0) target = $region37
    $region36: #{tpu_custom_call.1} parent=1 // pred_region
      %121 = dma.done [#allocation4], 256
    $region37: #{tpu_custom_call.1} parent=1 // pred_fallthru
      _
    %122 = vsyncpa [#allocation3], 1
    %123 = vsyncpa [#allocation6], 1
    %124 = vsyncpa [#allocation4], 1

</llo_original>
